<compile_context>
chip_gen: v7x
topology: tpu7x:2x2x1
jax: 0.10.0
libtpu: 0.0.40
codegen_flags: <defaults>
</compile_context>

<pallas_src>
import jax
import jax.numpy as jnp
from jax.experimental import pallas as pl
from jax.experimental.pallas import tpu as pltpu


def _outconv_dense_kernel(x_ref, w_ref, b_ref, o_ref):
    # x_ref: (C_in, TILE_R, 128)  VMEM   (batch dim squeezed by BlockSpec)
    # w_ref: (C_out, C_in)        SMEM   (scalar reads)
    # b_ref: (C_out,)             SMEM   (scalar reads)
    # o_ref: (C_out, TILE_R, 128) VMEM   (lane-dense output slabs)
    c_out, c_in = w_ref.shape
    # Hoisted input loads: each input-channel slab is loaded once and reused
    # for all output channels (cuts vector-load traffic by C_out x).
    xs = [x_ref[ci] for ci in range(c_in)]
    for co in range(c_out):
        acc = xs[0] * w_ref[co, 0]
        for ci in range(1, c_in):
            acc = acc + xs[ci] * w_ref[co, ci]
        o_ref[co] = acc + b_ref[co]


def _outconv_rows_kernel(x_ref, w_ref, b_ref, o_ref):
    # Fallback path for S % 128 != 0.
    # x_ref: (C_in, TILE_S) VMEM, o_ref: (C_out, TILE_S) VMEM.
    c_out, c_in = w_ref.shape
    xs = [x_ref[pl.ds(ci, 1), :] for ci in range(c_in)]
    for co in range(c_out):
        acc = xs[0] * w_ref[co, 0]
        for ci in range(1, c_in):
            acc = acc + xs[ci] * w_ref[co, ci]
        o_ref[pl.ds(co, 1), :] = acc + b_ref[co]


def outconv_pallas(x, weight, bias, *, target_elems=256 * 1024):
    """1x1x1 Conv3d forward (PyTorch OutConv semantics).

    x:      (N, C_in, D, H, W)   float32
    weight: (C_out, C_in, 1, 1, 1)
    bias:   (C_out,)
    returns (N, C_out, D, H, W)
    """
    n, c_in, d, h, w = x.shape
    c_out = weight.shape[0]
    s = d * h * w
    w_mat = weight.reshape(c_out, c_in)
    smem = pltpu.MemorySpace.SMEM
    itemsize = jnp.dtype(x.dtype).itemsize

    if s % 128 == 0:
        # ---- fast path: lane-dense (rows, 128) spatial slabs ----
        r = s // 128
        x4 = x.reshape(n, c_in, r, 128)          # metadata-only view

        # Tile in 128-lane rows: ~target_elems f32 per step, multiple of 8
        # (or the full extent if smaller).
        tile_r = min(r, max(8, (target_elems // 128 // 8) * 8))
        # Keep >= 2 parallel grid steps so both v7x TensorCores get work.
        while n * pl.cdiv(r, tile_r) < 2 and tile_r > 8:
            tile_r = max(8, ((tile_r // 2) // 8) * 8)

        grid = (n, pl.cdiv(r, tile_r))
        # Double-buffered in+out footprint + headroom; stays well inside
        # v7x's 64 MiB physical VMEM.
        step_bytes = (c_in + c_out) * tile_r * 128 * itemsize
        vmem_limit = int(min(max(2 * step_bytes + (4 << 20), 32 << 20), 56 << 20))

        out4 = pl.pallas_call(
            _outconv_dense_kernel,
            out_shape=jax.ShapeDtypeStruct((n, c_out, r, 128), x.dtype),
            grid_spec=pltpu.PrefetchScalarGridSpec(
                num_scalar_prefetch=0,
                grid=grid,
                in_specs=[
                    # batch dim squeezed -> kernel sees (C_in, TILE_R, 128)
                    pl.BlockSpec((None, c_in, tile_r, 128),
                                 lambda b, ri: (b, 0, ri, 0)),
                    pl.BlockSpec(memory_space=smem),
                    pl.BlockSpec(memory_space=smem),
                ],
                out_specs=pl.BlockSpec((None, c_out, tile_r, 128),
                                       lambda b, ri: (b, 0, ri, 0)),
            ),
            compiler_params=pltpu.CompilerParams(
                dimension_semantics=("parallel", "parallel"),
                vmem_limit_bytes=vmem_limit),
        )(x4, w_mat, bias)
        return out4.reshape(n, c_out, d, h, w)

    # ---- fallback: S not a multiple of 128 ----
    x3 = x.reshape(n, c_in, s)
    tile_s = s if s <= target_elems else max(128, (target_elems // 128) * 128)
    grid = (n, pl.cdiv(s, tile_s))
    out3 = pl.pallas_call(
        _outconv_rows_kernel,
        out_shape=jax.ShapeDtypeStruct((n, c_out, s), x.dtype),
        grid_spec=pltpu.PrefetchScalarGridSpec(
            num_scalar_prefetch=0,
            grid=grid,
            in_specs=[
                pl.BlockSpec((None, c_in, tile_s), lambda b, si: (b, 0, si)),
                pl.BlockSpec(memory_space=smem),
                pl.BlockSpec(memory_space=smem),
            ],
            out_specs=pl.BlockSpec((None, c_out, tile_s),
                                   lambda b, si: (b, 0, si)),
        ),
        compiler_params=pltpu.CompilerParams(
            dimension_semantics=("parallel", "parallel")),
    )(x3, w_mat, bias)
    return out3.reshape(n, c_out, d, h, w)


if __name__ == "__main__":
    key = jax.random.PRNGKey(0)
    k_x, k_w, k_b = jax.random.split(key, 3)

    # Small shapes consistent with OutConv(in_channels=4, out_channels=3).
    N, C_in, C_out, D, H, W = 2, 4, 3, 8, 16, 16

    x = jax.random.normal(k_x, (N, C_in, D, H, W), dtype=jnp.float32)
    # Deterministic synthetic params: Conv3d weight (C_out, C_in, 1, 1, 1), bias (C_out,)
    fan_in = C_in  # * 1 * 1 * 1
    bound = 1.0 / (fan_in ** 0.5)
    weight = jax.random.uniform(k_w, (C_out, C_in, 1, 1, 1),
                                minval=-bound, maxval=bound, dtype=jnp.float32)
    bias = jax.random.uniform(k_b, (C_out,),
                              minval=-bound, maxval=bound, dtype=jnp.float32)

    out = outconv_pallas(x, weight, bias)
    out = jax.block_until_ready(out)

    # Reference: pointwise 1x1x1 conv == channel einsum + bias.
    ref = jnp.einsum("ncdhw,oc->nodhw", x, weight.reshape(C_out, C_in))
    ref = ref + bias.reshape(1, C_out, 1, 1, 1)

    assert out.shape == (N, C_out, D, H, W), out.shape
    assert jnp.allclose(out, ref, atol=1e-5, rtol=1e-5), \
        float(jnp.max(jnp.abs(out - ref)))

    print("KERNEL_OK")
</pallas_src>

<mosaic_0001>
module attributes {stable_mosaic.version = 11 : i64} {
  func.func @_outconv_dense_kernel(%arg0: i32, %arg1: i32, %arg2: memref<1x4x16x128xf32, #tpu.memory_space<vmem>>, %arg3: memref<3x4xf32, #tpu.memory_space<smem>>, %arg4: memref<3xf32, #tpu.memory_space<smem>>, %arg5: memref<1x3x16x128xf32, #tpu.memory_space<vmem>>) attributes {dimension_semantics = [#tpu.dimension_semantics<parallel>, #tpu.dimension_semantics<parallel>], iteration_bounds = array<i64: 2, 1>, scalar_prefetch = 0 : i64, scratch_operands = 0 : i64, tpu.core_type = #tpu.core_type<tc>, window_params = [{transform_indices = @transform_0, window_bounds = array<i64: 1, 4, 16, 128>}, {transform_indices = @transform_1, window_bounds = array<i64: 3, 4>}, {transform_indices = @transform_2, window_bounds = array<i64: 3>}, {transform_indices = @transform_3, window_bounds = array<i64: 1, 3, 16, 128>}]} {
    %c0 = arith.constant 0 : index
    %c0_0 = arith.constant 0 : index
    %c0_1 = arith.constant 0 : index
    %c0_2 = arith.constant 0 : index
    %0 = vector.load %arg2[%c0, %c0_0, %c0_1, %c0_2] : memref<1x4x16x128xf32, #tpu.memory_space<vmem>>, vector<1x1x16x128xf32>
    %1 = vector.shape_cast %0 : vector<1x1x16x128xf32> to vector<16x128xf32>
    %c0_3 = arith.constant 0 : index
    %c1 = arith.constant 1 : index
    %c0_4 = arith.constant 0 : index
    %c0_5 = arith.constant 0 : index
    %2 = vector.load %arg2[%c0_3, %c1, %c0_4, %c0_5] : memref<1x4x16x128xf32, #tpu.memory_space<vmem>>, vector<1x1x16x128xf32>
    %3 = vector.shape_cast %2 : vector<1x1x16x128xf32> to vector<16x128xf32>
    %c0_6 = arith.constant 0 : index
    %c2 = arith.constant 2 : index
    %c0_7 = arith.constant 0 : index
    %c0_8 = arith.constant 0 : index
    %4 = vector.load %arg2[%c0_6, %c2, %c0_7, %c0_8] : memref<1x4x16x128xf32, #tpu.memory_space<vmem>>, vector<1x1x16x128xf32>
    %5 = vector.shape_cast %4 : vector<1x1x16x128xf32> to vector<16x128xf32>
    %c0_9 = arith.constant 0 : index
    %c3 = arith.constant 3 : index
    %c0_10 = arith.constant 0 : index
    %c0_11 = arith.constant 0 : index
    %6 = vector.load %arg2[%c0_9, %c3, %c0_10, %c0_11] : memref<1x4x16x128xf32, #tpu.memory_space<vmem>>, vector<1x1x16x128xf32>
    %7 = vector.shape_cast %6 : vector<1x1x16x128xf32> to vector<16x128xf32>
    %c0_12 = arith.constant 0 : index
    %c0_13 = arith.constant 0 : index
    %8 = memref.load %arg3[%c0_12, %c0_13] : memref<3x4xf32, #tpu.memory_space<smem>>
    %9 = vector.broadcast %8 : f32 to vector<16x128xf32>
    %10 = arith.mulf %1, %9 : vector<16x128xf32>
    %c0_14 = arith.constant 0 : index
    %c1_15 = arith.constant 1 : index
    %11 = memref.load %arg3[%c0_14, %c1_15] : memref<3x4xf32, #tpu.memory_space<smem>>
    %12 = vector.broadcast %11 : f32 to vector<16x128xf32>
    %13 = arith.mulf %3, %12 : vector<16x128xf32>
    %14 = arith.addf %10, %13 : vector<16x128xf32>
    %c0_16 = arith.constant 0 : index
    %c2_17 = arith.constant 2 : index
    %15 = memref.load %arg3[%c0_16, %c2_17] : memref<3x4xf32, #tpu.memory_space<smem>>
    %16 = vector.broadcast %15 : f32 to vector<16x128xf32>
    %17 = arith.mulf %5, %16 : vector<16x128xf32>
    %18 = arith.addf %14, %17 : vector<16x128xf32>
    %c0_18 = arith.constant 0 : index
    %c3_19 = arith.constant 3 : index
    %19 = memref.load %arg3[%c0_18, %c3_19] : memref<3x4xf32, #tpu.memory_space<smem>>
    %20 = vector.broadcast %19 : f32 to vector<16x128xf32>
    %21 = arith.mulf %7, %20 : vector<16x128xf32>
    %22 = arith.addf %18, %21 : vector<16x128xf32>
    %c0_20 = arith.constant 0 : index
    %23 = memref.load %arg4[%c0_20] : memref<3xf32, #tpu.memory_space<smem>>
    %24 = vector.broadcast %23 : f32 to vector<16x128xf32>
    %25 = arith.addf %22, %24 : vector<16x128xf32>
    %c0_21 = arith.constant 0 : index
    %c0_22 = arith.constant 0 : index
    %c0_23 = arith.constant 0 : index
    %c0_24 = arith.constant 0 : index
    %26 = vector.load %arg5[%c0_21, %c0_22, %c0_23, %c0_24] : memref<1x3x16x128xf32, #tpu.memory_space<vmem>>, vector<1x1x16x128xf32>
    %27 = vector.shape_cast %26 : vector<1x1x16x128xf32> to vector<16x128xf32>
    %28 = vector.shape_cast %25 : vector<16x128xf32> to vector<1x1x16x128xf32>
    tpu.vector_store %arg5[%c0_21, %c0_22, %c0_23, %c0_24], %28 {strides = array<i32>} : memref<1x3x16x128xf32, #tpu.memory_space<vmem>>, vector<1x1x16x128xf32>,
    %c1_25 = arith.constant 1 : index
    %c0_26 = arith.constant 0 : index
    %29 = memref.load %arg3[%c1_25, %c0_26] : memref<3x4xf32, #tpu.memory_space<smem>>
    %30 = vector.broadcast %29 : f32 to vector<16x128xf32>
    %31 = arith.mulf %1, %30 : vector<16x128xf32>
    %c1_27 = arith.constant 1 : index
    %c1_28 = arith.constant 1 : index
    %32 = memref.load %arg3[%c1_27, %c1_28] : memref<3x4xf32, #tpu.memory_space<smem>>
    %33 = vector.broadcast %32 : f32 to vector<16x128xf32>
    %34 = arith.mulf %3, %33 : vector<16x128xf32>
    %35 = arith.addf %31, %34 : vector<16x128xf32>
    %c1_29 = arith.constant 1 : index
    %c2_30 = arith.constant 2 : index
    %36 = memref.load %arg3[%c1_29, %c2_30] : memref<3x4xf32, #tpu.memory_space<smem>>
    %37 = vector.broadcast %36 : f32 to vector<16x128xf32>
    %38 = arith.mulf %5, %37 : vector<16x128xf32>
    %39 = arith.addf %35, %38 : vector<16x128xf32>
    %c1_31 = arith.constant 1 : index
    %c3_32 = arith.constant 3 : index
    %40 = memref.load %arg3[%c1_31, %c3_32] : memref<3x4xf32, #tpu.memory_space<smem>>
    %41 = vector.broadcast %40 : f32 to vector<16x128xf32>
    %42 = arith.mulf %7, %41 : vector<16x128xf32>
    %43 = arith.addf %39, %42 : vector<16x128xf32>
    %c1_33 = arith.constant 1 : index
    %44 = memref.load %arg4[%c1_33] : memref<3xf32, #tpu.memory_space<smem>>
    %45 = vector.broadcast %44 : f32 to vector<16x128xf32>
    %46 = arith.addf %43, %45 : vector<16x128xf32>
    %c0_34 = arith.constant 0 : index
    %c1_35 = arith.constant 1 : index
    %c0_36 = arith.constant 0 : index
    %c0_37 = arith.constant 0 : index
    %47 = vector.load %arg5[%c0_34, %c1_35, %c0_36, %c0_37] : memref<1x3x16x128xf32, #tpu.memory_space<vmem>>, vector<1x1x16x128xf32>
    %48 = vector.shape_cast %47 : vector<1x1x16x128xf32> to vector<16x128xf32>
    %49 = vector.shape_cast %46 : vector<16x128xf32> to vector<1x1x16x128xf32>
    tpu.vector_store %arg5[%c0_34, %c1_35, %c0_36, %c0_37], %49 {strides = array<i32>} : memref<1x3x16x128xf32, #tpu.memory_space<vmem>>, vector<1x1x16x128xf32>,
    %c2_38 = arith.constant 2 : index
    %c0_39 = arith.constant 0 : index
    %50 = memref.load %arg3[%c2_38, %c0_39] : memref<3x4xf32, #tpu.memory_space<smem>>
    %51 = vector.broadcast %50 : f32 to vector<16x128xf32>
    %52 = arith.mulf %1, %51 : vector<16x128xf32>
    %c2_40 = arith.constant 2 : index
    %c1_41 = arith.constant 1 : index
    %53 = memref.load %arg3[%c2_40, %c1_41] : memref<3x4xf32, #tpu.memory_space<smem>>
    %54 = vector.broadcast %53 : f32 to vector<16x128xf32>
    %55 = arith.mulf %3, %54 : vector<16x128xf32>
    %56 = arith.addf %52, %55 : vector<16x128xf32>
    %c2_42 = arith.constant 2 : index
    %c2_43 = arith.constant 2 : index
    %57 = memref.load %arg3[%c2_42, %c2_43] : memref<3x4xf32, #tpu.memory_space<smem>>
    %58 = vector.broadcast %57 : f32 to vector<16x128xf32>
    %59 = arith.mulf %5, %58 : vector<16x128xf32>
    %60 = arith.addf %56, %59 : vector<16x128xf32>
    %c2_44 = arith.constant 2 : index
    %c3_45 = arith.constant 3 : index
    %61 = memref.load %arg3[%c2_44, %c3_45] : memref<3x4xf32, #tpu.memory_space<smem>>
    %62 = vector.broadcast %61 : f32 to vector<16x128xf32>
    %63 = arith.mulf %7, %62 : vector<16x128xf32>
    %64 = arith.addf %60, %63 : vector<16x128xf32>
    %c2_46 = arith.constant 2 : index
    %65 = memref.load %arg4[%c2_46] : memref<3xf32, #tpu.memory_space<smem>>
    %66 = vector.broadcast %65 : f32 to vector<16x128xf32>
    %67 = arith.addf %64, %66 : vector<16x128xf32>
    %c0_47 = arith.constant 0 : index
    %c2_48 = arith.constant 2 : index
    %c0_49 = arith.constant 0 : index
    %c0_50 = arith.constant 0 : index
    %68 = vector.load %arg5[%c0_47, %c2_48, %c0_49, %c0_50] : memref<1x3x16x128xf32, #tpu.memory_space<vmem>>, vector<1x1x16x128xf32>
    %69 = vector.shape_cast %68 : vector<1x1x16x128xf32> to vector<16x128xf32>
    %70 = vector.shape_cast %67 : vector<16x128xf32> to vector<1x1x16x128xf32>
    tpu.vector_store %arg5[%c0_47, %c2_48, %c0_49, %c0_50], %70 {strides = array<i32>} : memref<1x3x16x128xf32, #tpu.memory_space<vmem>>, vector<1x1x16x128xf32>,
    return
  }
  func.func @transform_0(%arg0: i32, %arg1: i32) -> (i32, i32, i32, i32) {
    %c0_i32 = arith.constant 0 : i32
    %c0_i32_0 = arith.constant 0 : i32
    %c0_i32_1 = arith.constant 0 : i32
    return %arg0, %c0_i32, %arg1, %c0_i32_0 : i32, i32, i32, i32
  }
  func.func @transform_1(%arg0: i32, %arg1: i32) -> (i32, i32) {
    %c0_i32 = arith.constant 0 : i32
    %c0_i32_0 = arith.constant 0 : i32
    %c0_i32_1 = arith.constant 0 : i32
    return %c0_i32, %c0_i32_0 : i32, i32
  }
  func.func @transform_2(%arg0: i32, %arg1: i32) -> i32 {
    %c0_i32 = arith.constant 0 : i32
    %c0_i32_0 = arith.constant 0 : i32
    return %c0_i32 : i32
  }
  func.func @transform_3(%arg0: i32, %arg1: i32) -> (i32, i32, i32, i32) {
    %c0_i32 = arith.constant 0 : i32
    %c0_i32_0 = arith.constant 0 : i32
    %c0_i32_1 = arith.constant 0 : i32
    return %arg0, %c0_i32, %arg1, %c0_i32_0 : i32, i32, i32, i32
  }
}

</mosaic_0001>

<llo_original>
// kernel: tpu_custom_call.1
$region0: #{tpu_custom_call.1}
  #allocation0 [shape = 'u32[]', space=smem, size = 0x4, offset = 0x4, fixed_abs, tag = 'smem constant byte address 0x4 - core index']
  #allocation1 [shape = 'u32[144,128]{1,0:T(1,128)}', space=vmem, size = 0x12000, scoped, tag = 'internal scratch']
  %s0 = inlined_call_operand.hbm [shape: f32[2,4,16,128], index: 0, kind: input, shape index: {}]
  %s1 = inlined_call_operand.hbm [shape: f32[3,4], index: 1, kind: input, shape index: {}]
  %s2 = inlined_call_operand.vmem [shape: f32[3], index: 2, kind: input, shape index: {}]
  %s3 = inlined_call_operand.hbm [shape: f32[2,3,16,128], index: 3, kind: output, shape index: {}]
  %s4 = sld [smem:[#allocation0]]
  $region57: #{tpu_custom_call.1} parent=0
    _
  %s6 = ssub.s32 1, %s4
  %s7 = scalar_select 0, %s6, %s4
  $region1: #{tpu_custom_call.1} parent=0
    #allocation2 [shape = 'u8[65536]{0}', space=vmem, size = 0x10000, scoped, tag = 'input window, operand 0']
    #allocation3 [shape = 's32[2]{0}', space=sflag, size = 0x8, scoped, tag = 'scoped memory for tpu_custom_call.1']
    #allocation4 [shape = 's32[2]{0}', space=sflag, size = 0x8, scoped, tag = 'scoped memory for tpu_custom_call.1']
    #allocation5 [shape = 's32[2]{0}', space=sflag, size = 0x8, scoped, tag = 'scoped memory for tpu_custom_call.1']
    #allocation6 [shape = 's32[2]{0}', space=sflag, size = 0x8, scoped, tag = 'scoped memory for tpu_custom_call.1']
    #allocation7 [shape = 'u8[2048]{0}', space=smem, size = 0x800, scoped, tag = 'input window, operand 1, single buffered']
    #allocation8 [shape = 'u8[512]{0}', space=smem, size = 0x200, scoped, tag = 'input window, operand 2, single buffered']
    #allocation9 [shape = 'u8[49152]{0}', space=vmem, size = 0xc000, scoped, tag = 'output window, operand 0']
    %8 = vsyncpa [#allocation3], 0
    %s9 = scalar_lea.sflag [#allocation3], 1
    %10 = vsyncpa %s9, 0
    %11 = vsyncpa [#allocation5], 0
    %12 = vsyncpa [#allocation6], 0
    %13 = vsyncpa [#allocation4], 0
    %s14 = scalar_lea.sflag [#allocation4], 1
    %15 = vsyncpa %s14, 0
    loop: start=0, step=1, limit=4
    $region2: #{tpu_custom_call.1} parent=1 // loop_pre_header
      _
    $region3: #{tpu_custom_call.1} parent=1 // loop_header
      %s17 = sphi 0, %s21
      %p18 = scmp.ge.s32.totalorder %s17, 4
      %s24 = sphi 0, %s36
      %s25 = sphi 0, %s32
      %s26 = sphi 0, %s24
      %s27 = sphi 0, %s25
      %s28 = sphi 0, %s26
      %s29 = sphi 0, %s27
      %s41 = sphi 0, %s43
      %s44 = sphi 0, %s41
      %s45 = sphi 0, %s44
      %s61 = sphi 0, %s45
      %s65 = sphi 0, %s65
      %s67 = sphi 0, %s65
      %s68 = sphi 0, %s67
      %s82 = sphi 0, %s68
      %s86 = sphi 0, %s86
      %s88 = sphi 0, %s86
      %s89 = sphi 0, %s88
      %s103 = sphi 0, %s89
      %s111 = sphi 0, %s113
      %s114 = sphi 0, %s111
      %s115 = sphi 0, %s114
      %s131 = sphi 0, %s115
    $region4: #{tpu_custom_call.1} parent=1 // loop_header_branch
      %20 = sbr.rel (%p18) target = $region8
    $region5: #{tpu_custom_call.1} parent=1 // loop_body
      %s22 = ssub.s32 %s17, 1
      %s23 = ssub.s32 %s17, 2
      %s30 = sadd.s32 1, %s25
      %p31 = scmp.ge.s32.totalorder %s30, 1
      %s32 = scalar_select %p31, 0, %s30
      %s33 = sadd.s32 1, %s24
      %s34 = scalar_select %p31, %s33, %s24
      %p35 = scmp.ge.s32.totalorder %s34, 2
      %s36 = scalar_select %p35, 0, %s34
      %s37 = ssub.s32 %s24, %s36
      %s38 = ssub.s32 %s25, %s32
      %s39 = sor.u32 %s37, %s38
      %p40 = scmp.eq.s32.totalorder %s39, 0
      %s42 = sadd.s32 %s41, 1
      %s43 = scalar_select %p40, %s41, %s42
      %p46 = pneg %p40
      %p47 = scmp.eq.s32.totalorder %s17, 1
      %p48 = por %p46, %p47
      %p49 = scmp.ne.s32.totalorder %s41, %s44
      %p50 = scmp.eq.s32.totalorder %s17, 0
      %p51 = por %p49, %p50
      %p52 = scmp.ne.s32.totalorder %s41, %s44
      %p53 = scmp.eq.s32.totalorder %s22, 1
      %p54 = por %p52, %p53
      %p55 = scmp.ne.s32.totalorder %s44, %s45
      %p56 = scmp.eq.s32.totalorder %s22, 0
      %p57 = por %p55, %p56
      %p58 = scmp.ne.s32.totalorder %s44, %s45
      %p59 = scmp.eq.s32.totalorder %s23, 1
      %p60 = por %p58, %p59
      %p62 = scmp.ne.s32.totalorder %s45, %s61
      %p63 = scmp.eq.s32.totalorder %s23, 0
      %p64 = por %p62, %p63
      %s66 = sadd.s32 %s65, 1
      %p69 = scmp.eq.s32.totalorder %s17, 1
      %p70 = scmp.ne.s32.totalorder %s65, %s67
      %p71 = scmp.eq.s32.totalorder %s17, 0
      %p72 = por %p70, %p71
      %p73 = scmp.ne.s32.totalorder %s65, %s67
      %p74 = scmp.eq.s32.totalorder %s22, 1
      %p75 = por %p73, %p74
      %p76 = scmp.ne.s32.totalorder %s67, %s68
      %p77 = scmp.eq.s32.totalorder %s22, 0
      %p78 = por %p76, %p77
      %p79 = scmp.ne.s32.totalorder %s67, %s68
      %p80 = scmp.eq.s32.totalorder %s23, 1
      %p81 = por %p79, %p80
      %p83 = scmp.ne.s32.totalorder %s68, %s82
      %p84 = scmp.eq.s32.totalorder %s23, 0
      %p85 = por %p83, %p84
      %s87 = sadd.s32 %s86, 1
      %p90 = scmp.eq.s32.totalorder %s17, 1
      %p91 = scmp.ne.s32.totalorder %s86, %s88
      %p92 = scmp.eq.s32.totalorder %s17, 0
      %p93 = por %p91, %p92
      %p94 = scmp.ne.s32.totalorder %s86, %s88
      %p95 = scmp.eq.s32.totalorder %s22, 1
      %p96 = por %p94, %p95
      %p97 = scmp.ne.s32.totalorder %s88, %s89
      %p98 = scmp.eq.s32.totalorder %s22, 0
      %p99 = por %p97, %p98
      %p100 = scmp.ne.s32.totalorder %s88, %s89
      %p101 = scmp.eq.s32.totalorder %s23, 1
      %p102 = por %p100, %p101
      %p104 = scmp.ne.s32.totalorder %s89, %s103
      %p105 = scmp.eq.s32.totalorder %s23, 0
      %p106 = por %p104, %p105
      %s107 = ssub.s32 %s24, %s36
      %s108 = ssub.s32 %s25, %s32
      %s109 = sor.u32 %s107, %s108
      %p110 = scmp.eq.s32.totalorder %s109, 0
      %s112 = sadd.s32 %s111, 1
      %s113 = scalar_select %p110, %s111, %s112
      %p116 = pneg %p110
      %p117 = scmp.eq.s32.totalorder %s17, 1
      %p118 = por %p116, %p117
      %p119 = scmp.ne.s32.totalorder %s111, %s114
      %p120 = scmp.eq.s32.totalorder %s17, 0
      %p121 = por %p119, %p120
      %p122 = scmp.ne.s32.totalorder %s111, %s114
      %p123 = scmp.eq.s32.totalorder %s22, 1
      %p124 = por %p122, %p123
      %p125 = scmp.ne.s32.totalorder %s114, %s115
      %p126 = scmp.eq.s32.totalorder %s22, 0
      %p127 = por %p125, %p126
      %p128 = scmp.ne.s32.totalorder %s114, %s115
      %p129 = scmp.eq.s32.totalorder %s23, 1
      %p130 = por %p128, %p129
      %p132 = scmp.ne.s32.totalorder %s115, %s131
      %p133 = scmp.eq.s32.totalorder %s23, 0
      %p134 = por %p132, %p133
      %p135 = scmp.le.s32.totalorder 1, %s17
      %p136 = scmp.lt.s32.totalorder %s17, 3
      %p137 = pnand %p135, %p136
      %p138 = pneg %p137
      // Predicated region
      $region9: #{tpu_custom_call.1} parent=5 // pred_check
        _
      $region10: #{tpu_custom_call.1} parent=5 // pred_check_branch
        %140 = sbr.rel (%p137) target = $region12
      $region11: #{tpu_custom_call.1} parent=5 // pred_region
        %s141 = ssub.s32 %s17, 1
        // Predicated region
        $region13: #{tpu_custom_call.1} parent=11 // pred_check
          %p142 = pneg %p78
        $region14: #{tpu_custom_call.1} parent=11 // pred_check_branch
          %144 = sbr.rel (%p142) target = $region16
        $region15: #{tpu_custom_call.1} parent=11 // pred_region
          %s146 = ssub.s32 64, 64
          %147 = vsyncadd [#allocation5], %s146
          %150 = dma.hbm_to_smem %s1, 64, [#allocation7], [#allocation5]
        $region16: #{tpu_custom_call.1} parent=11 // pred_fallthru
          _
        // Predicated region
        $region17: #{tpu_custom_call.1} parent=11 // pred_check
          %p151 = pneg %p99
        $region18: #{tpu_custom_call.1} parent=11 // pred_check_branch
          %153 = sbr.rel (%p151) target = $region20
        $region19: #{tpu_custom_call.1} parent=11 // pred_region
          %s155 = ssub.s32 16, 16
          %156 = vsyncadd [#allocation6], %s155
          %s158 = sshll.u32 %s2, 4
          %s159 = int_to_ptr.vmem [resolvable:$true] %s158
          %161 = dma.vmem_to_smem %s159, 16, [#allocation8], [#allocation6]
        $region20: #{tpu_custom_call.1} parent=11 // pred_fallthru
          _
      $region12: #{tpu_custom_call.1} parent=5 // pred_fallthru
        _
      %p162 = scmp.lt.s32.totalorder %s17, 2
      // Predicated region
      $region21: #{tpu_custom_call.1} parent=5 // pred_check
        %p163 = pneg %p162
      $region22: #{tpu_custom_call.1} parent=5 // pred_check_branch
        %165 = sbr.rel (%p163) target = $region24
      $region23: #{tpu_custom_call.1} parent=5 // pred_region
        // Predicated region
        $region25: #{tpu_custom_call.1} parent=23 // pred_check
          %p166 = pneg %p51
        $region26: #{tpu_custom_call.1} parent=23 // pred_check_branch
          %168 = sbr.rel (%p166) target = $region28
        $region27: #{tpu_custom_call.1} parent=23 // pred_region
          %s169 = sand.u32 %s41, 1
          %s170 = scalar_lea.sflag [#allocation3], %s169
          %s171 = sand.u32 %s41, 1
          %s172 = smul.addr %s171, 64
          %s173 = scalar_lea.vmem [#allocation2], %s172
          %s174 = smul.u32 2, %s25
          %s176 = ssub.s32 1024, 1024
          %177 = vsyncadd %s170, %s176
          %s178 = smul.addr %s24, 8
          %s179 = sadd.s32 %s174, %s178
          %s180 = smul.addr %s179, 128
          %s181 = scalar_lea.hbm %s0, %s180
          %s182 = sshll.u32 %s173, 4
          %s183 = int_to_ptr.vmem [resolvable:$true] %s182
          %188 = dma.hbm_to_vmem [thread:$0]  %s181, 1024, %s183, %s170, 128, 128, 8
        $region28: #{tpu_custom_call.1} parent=23 // pred_fallthru
          _
      $region24: #{tpu_custom_call.1} parent=5 // pred_fallthru
        _
      %p189 = scmp.le.s32.totalorder 1, %s17
      %p190 = scmp.lt.s32.totalorder %s17, 3
      %p191 = pnand %p189, %p190
      %p192 = pneg %p191
      // Predicated region
      $region29: #{tpu_custom_call.1} parent=5 // pred_check
        _
      $region30: #{tpu_custom_call.1} parent=5 // pred_check_branch
        %194 = sbr.rel (%p191) target = $region32
      $region31: #{tpu_custom_call.1} parent=5 // pred_region
        %s195 = ssub.s32 %s17, 1
        %s196 = sand.u32 %s44, 1
        %s197 = scalar_lea.sflag [#allocation3], %s196
        %s198 = sand.u32 %s44, 1
        %s199 = smul.addr %s198, 64
        %s200 = scalar_lea.vmem [#allocation2], %s199
        // Predicated region
        $region33: #{tpu_custom_call.1} parent=31 // pred_check
          %p201 = pneg %p57
        $region34: #{tpu_custom_call.1} parent=31 // pred_check_branch
          %203 = sbr.rel (%p201) target = $region36
        $region35: #{tpu_custom_call.1} parent=31 // pred_region
          %204 = dma.done %s197, 1024
        $region36: #{tpu_custom_call.1} parent=31 // pred_fallthru
          _
        // Predicated region
        $region37: #{tpu_custom_call.1} parent=31 // pred_check
          %p205 = pneg %p78
        $region38: #{tpu_custom_call.1} parent=31 // pred_check_branch
          %207 = sbr.rel (%p205) target = $region40
        $region39: #{tpu_custom_call.1} parent=31 // pred_region
          %208 = dma.done [#allocation5], 64
        $region40: #{tpu_custom_call.1} parent=31 // pred_fallthru
          _
        // Predicated region
        $region41: #{tpu_custom_call.1} parent=31 // pred_check
          %p209 = pneg %p99
        $region42: #{tpu_custom_call.1} parent=31 // pred_check_branch
          %211 = sbr.rel (%p209) target = $region44
        $region43: #{tpu_custom_call.1} parent=31 // pred_region
          %212 = dma.done [#allocation6], 16
        $region44: #{tpu_custom_call.1} parent=31 // pred_fallthru
          _
        %213 = sfence
        %s214 = sand.u32 %s44, 1
        %s215 = scalar_lea.sflag [#allocation3], %s214
        %s216 = sand.u32 %s44, 1
        %s217 = smul.addr %s216, 64
        %s218 = scalar_lea.vmem [#allocation2], %s217
        %p219 = pneg %p57
        %p220 = pneg %p54
        %p221 = pneg %p78
        %p222 = pneg %p75
        %p223 = pneg %p99
        %p224 = pneg %p96
        %p225 = pneg %p127
        %p226 = pneg %p124
        %s227 = sand.u32 %s114, 1
        %s228 = scalar_lea.sflag [#allocation4], %s227
        %s229 = sand.u32 %s114, 1
        %s230 = smul.addr %s229, 48
        %s231 = scalar_lea.vmem [#allocation9], %s230
        %s232 = smul.u32 2, %s27
        %s233 = smul.u32 2, %s27
        %v234 = vld [vmem:[%s200] sm:$0xff]
        %v235 = vld [vmem:[%s200 + $0x8] sm:$0xff]
        %s236 = scalar_lea.vmem %s200, 16 [#allocation2]
        %v237 = vld [vmem:[%s236] sm:$0xff]
        %v238 = vld [vmem:[%s236 + $0x8] sm:$0xff]
        %s239 = scalar_lea.vmem %s200, 32 [#allocation2]
        %v240 = vld [vmem:[%s239] sm:$0xff]
        %v241 = vld [vmem:[%s239 + $0x8] sm:$0xff]
        %s242 = scalar_lea.vmem %s200, 48 [#allocation2]
        %v243 = vld [vmem:[%s242] sm:$0xff]
        %v244 = vld [vmem:[%s242 + $0x8] sm:$0xff]
        %s245 = sld [smem:[#allocation7]]
        %v246 = vstv %s245
        %v247 = vmul.f32 %v234, %v246
        %v248 = vmul.f32 %v235, %v246
        %s249 = sld [smem:[#allocation7 + $0x1]]
        %v250 = vstv %s249
        %v251 = vmul.f32 %v237, %v250
        %v252 = vmul.f32 %v238, %v250
        %v253 = vadd.f32 %v247, %v251
        %v254 = vadd.f32 %v248, %v252
        %s255 = sld [smem:[#allocation7 + $0x2]]
        %v256 = vstv %s255
        %v257 = vmul.f32 %v240, %v256
        %v258 = vmul.f32 %v241, %v256
        %v259 = vadd.f32 %v253, %v257
        %v260 = vadd.f32 %v254, %v258
        %s261 = sld [smem:[#allocation7 + $0x3]]
        %v262 = vstv %s261
        %v263 = vmul.f32 %v243, %v262
        %v264 = vmul.f32 %v244, %v262
        %v265 = vadd.f32 %v259, %v263
        %v266 = vadd.f32 %v260, %v264
        %s267 = sld [smem:[#allocation8]]
        %v268 = vstv %s267
        %v269 = vadd.f32 %v265, %v268
        %v270 = vadd.f32 %v266, %v268
        %271 = vst [vmem:[%s231] sm:$0xff] %v269
        %272 = vst [vmem:[%s231 + $0x8] sm:$0xff] %v270
        %s273 = sld [smem:[#allocation7 + $0x80]]
        %v274 = vstv %s273
        %v275 = vmul.f32 %v234, %v274
        %v276 = vmul.f32 %v235, %v274
        %s277 = sld [smem:[#allocation7 + $0x81]]
        %v278 = vstv %s277
        %v279 = vmul.f32 %v237, %v278
        %v280 = vmul.f32 %v238, %v278
        %v281 = vadd.f32 %v275, %v279
        %v282 = vadd.f32 %v276, %v280
        %s283 = sld [smem:[#allocation7 + $0x82]]
        %v284 = vstv %s283
        %v285 = vmul.f32 %v240, %v284
        %v286 = vmul.f32 %v241, %v284
        %v287 = vadd.f32 %v281, %v285
        %v288 = vadd.f32 %v282, %v286
        %s289 = sld [smem:[#allocation7 + $0x83]]
        %v290 = vstv %s289
        %v291 = vmul.f32 %v243, %v290
        %v292 = vmul.f32 %v244, %v290
        %v293 = vadd.f32 %v287, %v291
        %v294 = vadd.f32 %v288, %v292
        %s295 = sld [smem:[#allocation8 + $0x1]]
        %v296 = vstv %s295
        %v297 = vadd.f32 %v293, %v296
        %v298 = vadd.f32 %v294, %v296
        %s299 = scalar_lea.vmem %s231, 16 [#allocation9]
        %300 = vst [vmem:[%s299] sm:$0xff] %v297
        %301 = vst [vmem:[%s299 + $0x8] sm:$0xff] %v298
        %s302 = sld [smem:[#allocation7 + $0x100]]
        %v303 = vstv %s302
        %v304 = vmul.f32 %v234, %v303
        %v305 = vmul.f32 %v235, %v303
        %s306 = sld [smem:[#allocation7 + $0x101]]
        %v307 = vstv %s306
        %v308 = vmul.f32 %v237, %v307
        %v309 = vmul.f32 %v238, %v307
        %v310 = vadd.f32 %v304, %v308
        %v311 = vadd.f32 %v305, %v309
        %s312 = sld [smem:[#allocation7 + $0x102]]
        %v313 = vstv %s312
        %v314 = vmul.f32 %v240, %v313
        %v315 = vmul.f32 %v241, %v313
        %v316 = vadd.f32 %v310, %v314
        %v317 = vadd.f32 %v311, %v315
        %s318 = sld [smem:[#allocation7 + $0x103]]
        %v319 = vstv %s318
        %v320 = vmul.f32 %v243, %v319
        %v321 = vmul.f32 %v244, %v319
        %v322 = vadd.f32 %v316, %v320
        %v323 = vadd.f32 %v317, %v321
        %s324 = sld [smem:[#allocation8 + $0x2]]
        %v325 = vstv %s324
        %v326 = vadd.f32 %v322, %v325
        %v327 = vadd.f32 %v323, %v325
        %s328 = scalar_lea.vmem %s231, 32 [#allocation9]
        %329 = vst [vmem:[%s328] sm:$0xff] %v326
        %330 = vst [vmem:[%s328 + $0x8] sm:$0xff] %v327
        %s331 = sand.u32 %s114, 1
        %s332 = scalar_lea.sflag [#allocation4], %s331
        %s333 = sand.u32 %s114, 1
        %s334 = smul.addr %s333, 48
        %s335 = scalar_lea.vmem [#allocation9], %s334
        // Predicated region
        $region45: #{tpu_custom_call.1} parent=31 // pred_check
          %p336 = pneg %p124
        $region46: #{tpu_custom_call.1} parent=31 // pred_check_branch
          %338 = sbr.rel (%p336) target = $region48
        $region47: #{tpu_custom_call.1} parent=31 // pred_region
          %s339 = smul.u32 2, %s27
          %s341 = ssub.s32 768, 768
          %342 = vsyncadd %s332, %s341
          %s343 = smul.addr %s26, 6
          %s344 = sadd.s32 %s339, %s343
          %s345 = smul.addr %s344, 128
          %s346 = scalar_lea.hbm %s3, %s345
          %s347 = sshll.u32 %s335, 4
          %s348 = int_to_ptr.vmem [resolvable:$true] %s347
          %353 = dma.vmem_to_hbm [thread:$0]  %s348, 768, %s346, %s332, 128, 128, 8
        $region48: #{tpu_custom_call.1} parent=31 // pred_fallthru
          _
      $region32: #{tpu_custom_call.1} parent=5 // pred_fallthru
        _
      %p354 = scmp.le.s32.totalorder 2, %s17
      // Predicated region
      $region49: #{tpu_custom_call.1} parent=5 // pred_check
        %p355 = pneg %p354
      $region50: #{tpu_custom_call.1} parent=5 // pred_check_branch
        %357 = sbr.rel (%p355) target = $region52
      $region51: #{tpu_custom_call.1} parent=5 // pred_region
        %s358 = ssub.s32 %s17, 2
        // Predicated region
        $region53: #{tpu_custom_call.1} parent=51 // pred_check
          %p359 = pneg %p130
        $region54: #{tpu_custom_call.1} parent=51 // pred_check_branch
          %361 = sbr.rel (%p359) target = $region56
        $region55: #{tpu_custom_call.1} parent=51 // pred_region
          %s362 = sand.u32 %s115, 1
          %s363 = scalar_lea.sflag [#allocation4], %s362
          %s364 = sand.u32 %s115, 1
          %s365 = smul.addr %s364, 48
          %s366 = scalar_lea.vmem [#allocation9], %s365
          %367 = dma.done %s363, 768
        $region56: #{tpu_custom_call.1} parent=51 // pred_fallthru
          _
      $region52: #{tpu_custom_call.1} parent=5 // pred_fallthru
        _
    $region6: #{tpu_custom_call.1} parent=1 // loop_footer
      %s21 = sadd.s32 1, %s17
    $region7: #{tpu_custom_call.1} parent=1 // loop_footer_branch
      %16 = sbr.rel target = $region3
    $region8: #{tpu_custom_call.1} parent=1 // loop_exit
      _
    %368 = vsyncpa [#allocation3], 1
    %s369 = scalar_lea.sflag [#allocation3], 1
    %370 = vsyncpa %s369, 1
    %371 = vsyncpa [#allocation4], 1
    %s372 = scalar_lea.sflag [#allocation4], 1
    %373 = vsyncpa %s372, 1
    %374 = vsyncpa [#allocation5], 1
    %s375 = scalar_lea.sflag [#allocation5], 1
    %376 = vsyncpa %s375, 1
    %377 = vsyncpa [#allocation6], 1
    %s378 = scalar_lea.sflag [#allocation6], 1
    %379 = vsyncpa %s378, 1

</llo_original>
